<compile_context>
chip_gen: v7x
topology: tpu7x:2x2x1
jax: 0.10.0
libtpu: 0.0.40
codegen_flags: <defaults>
</compile_context>

<pallas_src>
import jax
import jax.numpy as jnp
from jax.experimental import pallas as pl
from jax.experimental.pallas import tpu as pltpu


def _round_up(n, m):
    return ((n + m - 1) // m) * m


def _model1_layer_kernel(x_ref, w_ref, score_ref, sum_ref, ssq_ref, act_ref):
    """One grid step == one layer. The layer axis is sequential ('arbitrary').

    x_ref     : (Bp, Wp)    f32 VMEM, resident (constant block index)
    w_ref     : (1, Wp, Wp) VMEM, streamed per layer (double-buffered DMA)
    score_ref : (Bp, Wp)    f32 VMEM, resident output, stored on last layer only
    sum_ref   : (L,)        f32 SMEM, raw per-layer sum of activations
    ssq_ref   : (L,)        f32 SMEM, raw per-layer sum of squared activations
    act_ref   : (Bp, Wp)    f32 VMEM scratch, activation carried across layers
    """
    l = pl.program_id(0)

    @pl.when(l == 0)
    def _():
        act_ref[...] = x_ref[...]

    # torch.nn.Linear(bias=False): y = x @ W.T with W[out, in]; the wrapper has
    # pre-transposed once to [layer, in, out], so the MXU is fed directly.
    a = jnp.tanh(
        jnp.dot(act_ref[...], w_ref[0], preferred_element_type=jnp.float32)
    )
    act_ref[...] = a

    # Raw one-pass partial stats; abs(mean)/sqrt(var) are finalized in the
    # wrapper. Padded rows/cols are exactly zero (tanh(0) == 0), so they add
    # nothing to the sums.
    sum_ref[l] = jnp.sum(a)
    ssq_ref[l] = jnp.sum(a * a)

    @pl.when(l == pl.num_programs(0) - 1)
    def _():
        score_ref[...] = a


def model1_forward(x, weights, *, weights_dtype=jnp.float32):
    """x: [B, W] f32; weights: [L, W, W] f32 in torch Linear layout W[out, in].

    Returns (score [B, W], means [L], stds [L]) matching Model1.forward with
    activation_fun = tanh (population std, ddof=0, as in the numpy reference)."""
    B, W = x.shape
    L = weights.shape[0]
    assert weights.shape == (L, W, W)

    # Lane-dense padding: last dim -> multiple of 128, batch -> multiple of 8.
    Wp = _round_up(max(W, 128), 128)
    Bp = _round_up(max(B, 8), 8)

    # Pre-transpose once (outside the kernel) to [layer, in, out], then zero-pad.
    w_t = jnp.transpose(weights, (0, 2, 1))
    w_p = jnp.pad(w_t, ((0, 0), (0, Wp - W), (0, Wp - W))).astype(weights_dtype)
    x_p = jnp.pad(x, ((0, Bp - B), (0, Wp - W)))

    w_itemsize = jnp.dtype(weights_dtype).itemsize
    # x + score + activation scratch + double-buffered weight tile, with
    # headroom; capped at 64 MiB so the same config fits v7x physical VMEM.
    vmem_bytes = 3 * Bp * Wp * 4 + 2 * Wp * Wp * w_itemsize
    vmem_limit = int(min(max(4 * vmem_bytes, 16 << 20), 64 << 20))

    cost = pl.CostEstimate(
        flops=2 * L * Bp * Wp * Wp,
        transcendentals=L * Bp * Wp,
        bytes_accessed=L * Wp * Wp * w_itemsize + 2 * Bp * Wp * 4,
    )

    score_p, sums, ssqs = pl.pallas_call(
        _model1_layer_kernel,
        grid=(L,),
        out_shape=(
            jax.ShapeDtypeStruct((Bp, Wp), jnp.float32),
            jax.ShapeDtypeStruct((L,), jnp.float32),
            jax.ShapeDtypeStruct((L,), jnp.float32),
        ),
        in_specs=[
            pl.BlockSpec((Bp, Wp), lambda l: (0, 0)),        # x: resident
            pl.BlockSpec((1, Wp, Wp), lambda l: (l, 0, 0)),  # weights: streamed
        ],
        out_specs=(
            pl.BlockSpec((Bp, Wp), lambda l: (0, 0)),        # score: resident
            pl.BlockSpec(memory_space=pltpu.SMEM),           # per-layer sums
            pl.BlockSpec(memory_space=pltpu.SMEM),           # per-layer sum-sqs
        ),
        scratch_shapes=[pltpu.VMEM((Bp, Wp), jnp.float32)],  # activation carry
        compiler_params=pltpu.CompilerParams(
            dimension_semantics=("arbitrary",),
            vmem_limit_bytes=vmem_limit,
        ),
        cost_estimate=cost,
    )(x_p, w_p)

    # Finalize stats in the wrapper (partial sums -> abs(mean), population std).
    inv_n = 1.0 / float(B * W)
    m = sums * inv_n
    means = jnp.abs(m)
    stds = jnp.sqrt(jnp.maximum(ssqs * inv_n - m * m, 0.0))

    return score_p[:B, :W], means, stds


def _reference_forward(x, weights):
    """Pure-JAX reference matching the PyTorch forward (activation = tanh)."""
    score = x
    means, stds = [], []
    for i in range(weights.shape[0]):
        score = jnp.tanh(score @ weights[i].T)
        means.append(jnp.abs(jnp.mean(score)))
        stds.append(jnp.std(score))  # ddof=0, same as numpy's .std()
    return score, jnp.stack(means), jnp.stack(stds)


if __name__ == "__main__":
    num_layers = 4
    layer_width = 32
    batch_size = 8

    key = jax.random.PRNGKey(0)
    kx, kw = jax.random.split(key)

    x = jax.random.normal(kx, (batch_size, layer_width), dtype=jnp.float32)
    # init_strategy = 'Part3 - N(0, 0.1)': weight ~ N(0, 0.1), no bias.
    weights = 0.1 * jax.random.normal(
        kw, (num_layers, layer_width, layer_width), dtype=jnp.float32
    )

    score, means, stds = jax.block_until_ready(model1_forward(x, weights))

    # Sanity check against the pure-JAX reference.
    ref_score, ref_means, ref_stds = _reference_forward(x, weights)
    assert jnp.allclose(score, ref_score, atol=1e-5), "score mismatch"
    assert jnp.allclose(means, ref_means, atol=1e-5), "means mismatch"
    assert jnp.allclose(stds, ref_stds, atol=1e-5), "stds mismatch"

    print("KERNEL_OK")
</pallas_src>

<mosaic_0001>
module attributes {stable_mosaic.version = 11 : i64} {
  func.func @_model1_layer_kernel(%arg0: i32, %arg1: memref<8x128xf32, #tpu.memory_space<vmem>>, %arg2: memref<1x128x128xf32, #tpu.memory_space<vmem>>, %arg3: memref<8x128xf32, #tpu.memory_space<vmem>>, %arg4: memref<4xf32, #tpu.memory_space<smem>>, %arg5: memref<4xf32, #tpu.memory_space<smem>>, %arg6: memref<8x128xf32, #tpu.memory_space<vmem>>) attributes {dimension_semantics = [#tpu.dimension_semantics<arbitrary>], iteration_bounds = array<i64: 4>, scalar_prefetch = 0 : i64, scratch_operands = 1 : i64, tpu.core_type = #tpu.core_type<tc>, window_params = [{pipeline_mode = #tpu.pipeline_mode<synchronous>, transform_indices = @transform_0, window_bounds = array<i64: 8, 128>}, {transform_indices = @transform_1, window_bounds = array<i64: 1, 128, 128>}, {pipeline_mode = #tpu.pipeline_mode<synchronous>, transform_indices = @transform_2, window_bounds = array<i64: 8, 128>}, {transform_indices = @transform_3, window_bounds = array<i64: 4>}, {transform_indices = @transform_4, window_bounds = array<i64: 4>}]} {
    %c0_i32 = arith.constant 0 : i32
    %0 = arith.cmpi eq, %arg0, %c0_i32 : i32
    %1 = arith.extui %0 : i1 to i32
    %c0_i32_0 = arith.constant 0 : i32
    %2 = arith.cmpi ne, %1, %c0_i32_0 : i32
    scf.if %2 {
      %c0_10 = arith.constant 0 : index
      %c0_11 = arith.constant 0 : index
      %25 = vector.load %arg1[%c0_10, %c0_11] : memref<8x128xf32, #tpu.memory_space<vmem>>, vector<8x128xf32>
      %c0_12 = arith.constant 0 : index
      %c0_13 = arith.constant 0 : index
      %26 = vector.load %arg6[%c0_12, %c0_13] : memref<8x128xf32, #tpu.memory_space<vmem>>, vector<8x128xf32>
      tpu.vector_store %arg6[%c0_12, %c0_13], %25 {strides = array<i32>} : memref<8x128xf32, #tpu.memory_space<vmem>>, vector<8x128xf32>,
    } else {
    }
    %c0 = arith.constant 0 : index
    %c0_1 = arith.constant 0 : index
    %3 = vector.load %arg6[%c0, %c0_1] : memref<8x128xf32, #tpu.memory_space<vmem>>, vector<8x128xf32>
    %c0_2 = arith.constant 0 : index
    %c0_3 = arith.constant 0 : index
    %c0_4 = arith.constant 0 : index
    %4 = vector.load %arg2[%c0_2, %c0_3, %c0_4] : memref<1x128x128xf32, #tpu.memory_space<vmem>>, vector<1x128x128xf32>
    %5 = vector.shape_cast %4 : vector<1x128x128xf32> to vector<128x128xf32>
    %cst = arith.constant dense<0.000000e+00> : vector<8x128xf32>
    %6 = tpu.matmul %3, %5, %cst {dimension_numbers = #tpu.dot_dimension_numbers<[1], [0], [0], [1], [0, 0, 1, 1], [], []>} : vector<8x128xf32>, vector<128x128xf32>, vector<8x128xf32> -> vector<8x128xf32>
    %7 = math.tanh %6 : vector<8x128xf32>
    %c0_5 = arith.constant 0 : index
    %c0_6 = arith.constant 0 : index
    %8 = vector.load %arg6[%c0_5, %c0_6] : memref<8x128xf32, #tpu.memory_space<vmem>>, vector<8x128xf32>
    tpu.vector_store %arg6[%c0_5, %c0_6], %7 {strides = array<i32>} : memref<8x128xf32, #tpu.memory_space<vmem>>, vector<8x128xf32>,
    %9 = vector.shape_cast %7 : vector<8x128xf32> to vector<1x8x128xf32>
    %cst_7 = arith.constant dense<0.000000e+00> : vector<1xf32>
    %10 = vector.multi_reduction <add>, %9, %cst_7 [1, 2] : vector<1x8x128xf32> to vector<1xf32>
    %11 = vector.shape_cast %10 : vector<1xf32> to vector<1x1x1xf32>
    %12 = vector.extract %11[0, 0, 0] : f32 from vector<1x1x1xf32>
    %13 = arith.index_cast %arg0 : i32 to index
    %14 = memref.load %arg4[%13] : memref<4xf32, #tpu.memory_space<smem>>
    memref.store %12, %arg4[%13] : memref<4xf32, #tpu.memory_space<smem>>
    %15 = arith.mulf %7, %7 : vector<8x128xf32>
    %16 = vector.shape_cast %15 : vector<8x128xf32> to vector<1x8x128xf32>
    %cst_8 = arith.constant dense<0.000000e+00> : vector<1xf32>
    %17 = vector.multi_reduction <add>, %16, %cst_8 [1, 2] : vector<1x8x128xf32> to vector<1xf32>
    %18 = vector.shape_cast %17 : vector<1xf32> to vector<1x1x1xf32>
    %19 = vector.extract %18[0, 0, 0] : f32 from vector<1x1x1xf32>
    %20 = arith.index_cast %arg0 : i32 to index
    %21 = memref.load %arg5[%20] : memref<4xf32, #tpu.memory_space<smem>>
    memref.store %19, %arg5[%20] : memref<4xf32, #tpu.memory_space<smem>>
    %c3_i32 = arith.constant 3 : i32
    %22 = arith.cmpi eq, %arg0, %c3_i32 : i32
    %23 = arith.extui %22 : i1 to i32
    %c0_i32_9 = arith.constant 0 : i32
    %24 = arith.cmpi ne, %23, %c0_i32_9 : i32
    scf.if %24 {
      %c0_10 = arith.constant 0 : index
      %c0_11 = arith.constant 0 : index
      %25 = vector.load %arg3[%c0_10, %c0_11] : memref<8x128xf32, #tpu.memory_space<vmem>>, vector<8x128xf32>
      tpu.vector_store %arg3[%c0_10, %c0_11], %7 {strides = array<i32>} : memref<8x128xf32, #tpu.memory_space<vmem>>, vector<8x128xf32>,
    } else {
    }
    return
  }
  func.func @transform_0(%arg0: i32) -> (i32, i32) {
    %c0_i32 = arith.constant 0 : i32
    %c0_i32_0 = arith.constant 0 : i32
    %c0_i32_1 = arith.constant 0 : i32
    return %c0_i32, %c0_i32_0 : i32, i32
  }
  func.func @transform_1(%arg0: i32) -> (i32, i32, i32) {
    %c0_i32 = arith.constant 0 : i32
    %c0_i32_0 = arith.constant 0 : i32
    %c0_i32_1 = arith.constant 0 : i32
    return %arg0, %c0_i32, %c0_i32_0 : i32, i32, i32
  }
  func.func @transform_2(%arg0: i32) -> (i32, i32) {
    %c0_i32 = arith.constant 0 : i32
    %c0_i32_0 = arith.constant 0 : i32
    %c0_i32_1 = arith.constant 0 : i32
    return %c0_i32, %c0_i32_0 : i32, i32
  }
  func.func @transform_3(%arg0: i32) -> i32 {
    %c0_i32 = arith.constant 0 : i32
    %c0_i32_0 = arith.constant 0 : i32
    return %c0_i32 : i32
  }
  func.func @transform_4(%arg0: i32) -> i32 {
    %c0_i32 = arith.constant 0 : i32
    %c0_i32_0 = arith.constant 0 : i32
    return %c0_i32 : i32
  }
}

</mosaic_0001>

<llo_original>
// kernel: tpu_custom_call.1
$region0: #{tpu_custom_call.1}
  #allocation0 [shape = 'u32[]', space=smem, size = 0x4, offset = 0x4, fixed_abs, tag = 'smem constant byte address 0x4 - core index']
  #allocation1 [shape = 'u32[144,128]{1,0:T(1,128)}', space=vmem, size = 0x12000, scoped, tag = 'internal scratch']
  #allocation2 [shape = 'f32[8,128]{1,0:T(8,128)}', space=vmem, size = 0x1000, scoped, tag = 'scratch operand']
  %s0 = inlined_call_operand.hbm [shape: f32[8,128], index: 0, kind: input, shape index: {}]
  %s1 = inlined_call_operand.hbm [shape: f32[4,128,128], index: 1, kind: input, shape index: {}]
  %s2 = inlined_call_operand.hbm [shape: f32[8,128], index: 2, kind: output, shape index: {0}]
  %s3 = inlined_call_operand.hbm [shape: f32[4], index: 3, kind: output, shape index: {1}]
  %s4 = inlined_call_operand.hbm [shape: f32[4], index: 4, kind: output, shape index: {2}]
  %5 = xla_tuple %s2, %s3, %s4
  %s6 = sld [smem:[#allocation0]]
  $region73: #{tpu_custom_call.1} parent=0
    _
  %s8 = ssub.s32 1, %s6
  %s9 = scalar_select 0, %s8, %s6
  $region1: #{tpu_custom_call.1} parent=0
    #allocation3 [shape = 'u8[4096]{0}', space=vmem, size = 0x1000, scoped, tag = 'input window, operand 0, single buffered']
    #allocation4 [shape = 's32[2]{0}', space=sflag, size = 0x8, scoped, tag = 'scoped memory for tpu_custom_call.1']
    #allocation5 [shape = 's32[2]{0}', space=sflag, size = 0x8, scoped, tag = 'scoped memory for tpu_custom_call.1']
    #allocation6 [shape = 's32[2]{0}', space=sflag, size = 0x8, scoped, tag = 'scoped memory for tpu_custom_call.1']
    #allocation7 [shape = 'u8[131072]{0}', space=vmem, size = 0x20000, scoped, tag = 'input window, operand 1']
    #allocation8 [shape = 's32[2]{0}', space=sflag, size = 0x8, scoped, tag = 'scoped memory for tpu_custom_call.1']
    #allocation9 [shape = 'u8[4096]{0}', space=vmem, size = 0x1000, scoped, tag = 'output window, operand 0, single buffered']
    #allocation10 [shape = 'u8[512]{0}', space=smem, size = 0x200, scoped, tag = 'output window, operand 1, single buffered']
    #allocation11 [shape = 'u8[512]{0}', space=smem, size = 0x200, scoped, tag = 'output window, operand 2, single buffered']
    #allocation12 [shape = 's32[1]{0}', space=sflag, size = 0x4, scoped, tag = 'scoped memory for tpu_custom_call.1']
    %10 = vsyncpa [#allocation4], 0
    %11 = vsyncpa [#allocation8], 0
    %s12 = scalar_lea.sflag [#allocation8], 1
    %13 = vsyncpa %s12, 0
    %14 = vsyncpa [#allocation5], 0
    %15 = vsyncpa [#allocation6], 0
    %16 = vsyncpa [#allocation12], 0
    loop: start=0, step=1, limit=6
    $region2: #{tpu_custom_call.1} parent=1 // loop_pre_header
      _
    $region3: #{tpu_custom_call.1} parent=1 // loop_header
      %s18 = sphi 0, %s22
      %p19 = scmp.ge.s32.totalorder %s18, 6
      %s26 = sphi 0, %s26
      %s28 = sphi 0, %s26
      %s29 = sphi 0, %s28
      %s43 = sphi 0, %s29
      %s49 = sphi 0, %s51
      %s52 = sphi 0, %s49
      %s53 = sphi 0, %s52
      %s69 = sphi 0, %s53
      %s73 = sphi 0, %s73
      %s75 = sphi 0, %s73
      %s76 = sphi 0, %s75
      %s90 = sphi 0, %s76
      %s94 = sphi 0, %s94
      %s96 = sphi 0, %s94
      %s97 = sphi 0, %s96
      %s111 = sphi 0, %s97
      %s115 = sphi 0, %s115
      %s117 = sphi 0, %s115
      %s118 = sphi 0, %s117
      %s132 = sphi 0, %s118
    $region4: #{tpu_custom_call.1} parent=1 // loop_header_branch
      %21 = sbr.rel (%p19) target = $region8
    $region5: #{tpu_custom_call.1} parent=1 // loop_body
      %s23 = ssub.s32 %s18, 1
      %s24 = ssub.s32 %s18, 2
      %s25 = sadd.s32 %s18, 1
      %s27 = sadd.s32 %s26, 1
      %p30 = scmp.eq.s32.totalorder %s18, 3
      %p31 = scmp.ne.s32.totalorder %s26, %s28
      %p32 = scmp.eq.s32.totalorder %s18, 0
      %p33 = por %p31, %p32
      %p34 = scmp.ne.s32.totalorder %s26, %s28
      %p35 = scmp.eq.s32.totalorder %s23, 3
      %p36 = por %p34, %p35
      %p37 = scmp.ne.s32.totalorder %s28, %s29
      %p38 = scmp.eq.s32.totalorder %s23, 0
      %p39 = por %p37, %p38
      %p40 = scmp.ne.s32.totalorder %s28, %s29
      %p41 = scmp.eq.s32.totalorder %s24, 3
      %p42 = por %p40, %p41
      %p44 = scmp.ne.s32.totalorder %s29, %s43
      %p45 = scmp.eq.s32.totalorder %s24, 0
      %p46 = por %p44, %p45
      %s47 = ssub.s32 %s18, %s25
      %p48 = scmp.eq.s32.totalorder %s47, 0
      %s50 = sadd.s32 %s49, 1
      %s51 = scalar_select %p48, %s49, %s50
      %p54 = pneg %p48
      %p55 = scmp.eq.s32.totalorder %s18, 3
      %p56 = por %p54, %p55
      %p57 = scmp.ne.s32.totalorder %s49, %s52
      %p58 = scmp.eq.s32.totalorder %s18, 0
      %p59 = por %p57, %p58
      %p60 = scmp.ne.s32.totalorder %s49, %s52
      %p61 = scmp.eq.s32.totalorder %s23, 3
      %p62 = por %p60, %p61
      %p63 = scmp.ne.s32.totalorder %s52, %s53
      %p64 = scmp.eq.s32.totalorder %s23, 0
      %p65 = por %p63, %p64
      %p66 = scmp.ne.s32.totalorder %s52, %s53
      %p67 = scmp.eq.s32.totalorder %s24, 3
      %p68 = por %p66, %p67
      %p70 = scmp.ne.s32.totalorder %s53, %s69
      %p71 = scmp.eq.s32.totalorder %s24, 0
      %p72 = por %p70, %p71
      %s74 = sadd.s32 %s73, 1
      %p77 = scmp.eq.s32.totalorder %s18, 3
      %p78 = scmp.ne.s32.totalorder %s73, %s75
      %p79 = scmp.eq.s32.totalorder %s18, 0
      %p80 = por %p78, %p79
      %p81 = scmp.ne.s32.totalorder %s73, %s75
      %p82 = scmp.eq.s32.totalorder %s23, 3
      %p83 = por %p81, %p82
      %p84 = scmp.ne.s32.totalorder %s75, %s76
      %p85 = scmp.eq.s32.totalorder %s23, 0
      %p86 = por %p84, %p85
      %p87 = scmp.ne.s32.totalorder %s75, %s76
      %p88 = scmp.eq.s32.totalorder %s24, 3
      %p89 = por %p87, %p88
      %p91 = scmp.ne.s32.totalorder %s76, %s90
      %p92 = scmp.eq.s32.totalorder %s24, 0
      %p93 = por %p91, %p92
      %s95 = sadd.s32 %s94, 1
      %p98 = scmp.eq.s32.totalorder %s18, 3
      %p99 = scmp.ne.s32.totalorder %s94, %s96
      %p100 = scmp.eq.s32.totalorder %s18, 0
      %p101 = por %p99, %p100
      %p102 = scmp.ne.s32.totalorder %s94, %s96
      %p103 = scmp.eq.s32.totalorder %s23, 3
      %p104 = por %p102, %p103
      %p105 = scmp.ne.s32.totalorder %s96, %s97
      %p106 = scmp.eq.s32.totalorder %s23, 0
      %p107 = por %p105, %p106
      %p108 = scmp.ne.s32.totalorder %s96, %s97
      %p109 = scmp.eq.s32.totalorder %s24, 3
      %p110 = por %p108, %p109
      %p112 = scmp.ne.s32.totalorder %s97, %s111
      %p113 = scmp.eq.s32.totalorder %s24, 0
      %p114 = por %p112, %p113
      %s116 = sadd.s32 %s115, 1
      %p119 = scmp.eq.s32.totalorder %s18, 3
      %p120 = scmp.ne.s32.totalorder %s115, %s117
      %p121 = scmp.eq.s32.totalorder %s18, 0
      %p122 = por %p120, %p121
      %p123 = scmp.ne.s32.totalorder %s115, %s117
      %p124 = scmp.eq.s32.totalorder %s23, 3
      %p125 = por %p123, %p124
      %p126 = scmp.ne.s32.totalorder %s117, %s118
      %p127 = scmp.eq.s32.totalorder %s23, 0
      %p128 = por %p126, %p127
      %p129 = scmp.ne.s32.totalorder %s117, %s118
      %p130 = scmp.eq.s32.totalorder %s24, 3
      %p131 = por %p129, %p130
      %p133 = scmp.ne.s32.totalorder %s118, %s132
      %p134 = scmp.eq.s32.totalorder %s24, 0
      %p135 = por %p133, %p134
      %p136 = scmp.le.s32.totalorder 1, %s18
      %p137 = scmp.lt.s32.totalorder %s18, 5
      %p138 = pnand %p136, %p137
      %p139 = pneg %p138
      // Predicated region
      $region9: #{tpu_custom_call.1} parent=5 // pred_check
        _
      $region10: #{tpu_custom_call.1} parent=5 // pred_check_branch
        %141 = sbr.rel (%p138) target = $region12
      $region11: #{tpu_custom_call.1} parent=5 // pred_region
        %s142 = ssub.s32 %s18, 1
        // Predicated region
        $region13: #{tpu_custom_call.1} parent=11 // pred_check
          %p143 = pneg %p39
        $region14: #{tpu_custom_call.1} parent=11 // pred_check_branch
          %145 = sbr.rel (%p143) target = $region16
        $region15: #{tpu_custom_call.1} parent=11 // pred_region
          %s147 = ssub.s32 128, 128
          %148 = vsyncadd [#allocation4], %s147
          %s150 = sshll.u32 [#allocation3], 4
          %s151 = int_to_ptr.vmem [resolvable:$true] %s150
          %153 = dma.hbm_to_vmem [thread:$0]  %s0, 128, %s151, [#allocation4]
        $region16: #{tpu_custom_call.1} parent=11 // pred_fallthru
          _
      $region12: #{tpu_custom_call.1} parent=5 // pred_fallthru
        _
      %p154 = scmp.lt.s32.totalorder %s18, 4
      // Predicated region
      $region17: #{tpu_custom_call.1} parent=5 // pred_check
        %p155 = pneg %p154
      $region18: #{tpu_custom_call.1} parent=5 // pred_check_branch
        %157 = sbr.rel (%p155) target = $region20
      $region19: #{tpu_custom_call.1} parent=5 // pred_region
        // Predicated region
        $region21: #{tpu_custom_call.1} parent=19 // pred_check
          %p158 = pneg %p59
        $region22: #{tpu_custom_call.1} parent=19 // pred_check_branch
          %160 = sbr.rel (%p158) target = $region24
        $region23: #{tpu_custom_call.1} parent=19 // pred_region
          %s161 = sand.u32 %s49, 1
          %s162 = scalar_lea.sflag [#allocation8], %s161
          %s163 = sand.u32 %s49, 1
          %s164 = smul.addr %s163, 128
          %s165 = scalar_lea.vmem [#allocation7], %s164
          %s167 = ssub.s32 2048, 2048
          %168 = vsyncadd %s162, %s167
          %s169 = smul.addr %s18, 16
          %s170 = smul.addr %s169, 128
          %s171 = scalar_lea.hbm %s1, %s170
          %s172 = sshll.u32 %s165, 4
          %s173 = int_to_ptr.vmem [resolvable:$true] %s172
          %178 = dma.hbm_to_vmem [thread:$0]  %s171, 2048, %s173, %s162, 128, 128, 8
        $region24: #{tpu_custom_call.1} parent=19 // pred_fallthru
          _
      $region20: #{tpu_custom_call.1} parent=5 // pred_fallthru
        _
      %p179 = scmp.le.s32.totalorder 1, %s18
      %p180 = scmp.lt.s32.totalorder %s18, 5
      %p181 = pnand %p179, %p180
      %p182 = pneg %p181
      // Predicated region
      $region25: #{tpu_custom_call.1} parent=5 // pred_check
        _
      $region26: #{tpu_custom_call.1} parent=5 // pred_check_branch
        %184 = sbr.rel (%p181) target = $region28
      $region27: #{tpu_custom_call.1} parent=5 // pred_region
        %s185 = ssub.s32 %s18, 1
        // Predicated region
        $region29: #{tpu_custom_call.1} parent=27 // pred_check
          %p186 = pneg %p39
        $region30: #{tpu_custom_call.1} parent=27 // pred_check_branch
          %188 = sbr.rel (%p186) target = $region32
        $region31: #{tpu_custom_call.1} parent=27 // pred_region
          %189 = dma.done [#allocation4], 128
        $region32: #{tpu_custom_call.1} parent=27 // pred_fallthru
          _
        %s190 = sand.u32 %s52, 1
        %s191 = scalar_lea.sflag [#allocation8], %s190
        %s192 = sand.u32 %s52, 1
        %s193 = smul.addr %s192, 128
        %s194 = scalar_lea.vmem [#allocation7], %s193
        // Predicated region
        $region33: #{tpu_custom_call.1} parent=27 // pred_check
          %p195 = pneg %p65
        $region34: #{tpu_custom_call.1} parent=27 // pred_check_branch
          %197 = sbr.rel (%p195) target = $region36
        $region35: #{tpu_custom_call.1} parent=27 // pred_region
          %198 = dma.done %s191, 2048
        $region36: #{tpu_custom_call.1} parent=27 // pred_fallthru
          _
        %p199 = pneg %p39
        %p200 = pneg %p36
        %s201 = sand.u32 %s52, 1
        %s202 = scalar_lea.sflag [#allocation8], %s201
        %s203 = sand.u32 %s52, 1
        %s204 = smul.addr %s203, 128
        %s205 = scalar_lea.vmem [#allocation7], %s204
        %p206 = pneg %p65
        %p207 = pneg %p62
        %p208 = pneg %p86
        %p209 = pneg %p83
        %p210 = pneg %p107
        %p211 = pneg %p104
        %p212 = pneg %p128
        %p213 = pneg %p125
        %p214 = scmp.eq.s32.totalorder %s23, 0
        // Predicated region
        $region37: #{tpu_custom_call.1} parent=27 // pred_check
          %p215 = pneg %p214
        $region38: #{tpu_custom_call.1} parent=27 // pred_check_branch
          %217 = sbr.rel (%p215) target = $region40
        $region39: #{tpu_custom_call.1} parent=27 // pred_region
          %v218 = vld [vmem:[#allocation3] sm:$0xff]
          %219 = vst [vmem:[#allocation2] sm:$0xff] %v218
        $region40: #{tpu_custom_call.1} parent=27 // pred_fallthru
          _
        %v220 = vld [vmem:[#allocation2] sm:$0xff]
        %v221 = vld [vmem:[%s194] sm:$0xff]
        %v222 = vld [vmem:[%s194 + $0x8] sm:$0xff]
        %v223 = vld [vmem:[%s194 + $0x10] sm:$0xff]
        %v224 = vld [vmem:[%s194 + $0x18] sm:$0xff]
        %v225 = vld [vmem:[%s194 + $0x20] sm:$0xff]
        %v226 = vld [vmem:[%s194 + $0x28] sm:$0xff]
        %v227 = vld [vmem:[%s194 + $0x30] sm:$0xff]
        %v228 = vld [vmem:[%s194 + $0x38] sm:$0xff]
        %v229 = vld [vmem:[%s194 + $0x40] sm:$0xff]
        %v230 = vld [vmem:[%s194 + $0x48] sm:$0xff]
        %v231 = vld [vmem:[%s194 + $0x50] sm:$0xff]
        %v232 = vld [vmem:[%s194 + $0x58] sm:$0xff]
        %v233 = vld [vmem:[%s194 + $0x60] sm:$0xff]
        %v234 = vld [vmem:[%s194 + $0x68] sm:$0xff]
        %v235 = vld [vmem:[%s194 + $0x70] sm:$0xff]
        %v236 = vld [vmem:[%s194 + $0x78] sm:$0xff]
        %237 = vmatprep.subr.mxu0 0.0
        %238 = vmatpush1.msra.mxu0 %v221
        %239 = vmatprep.subr.mxu0 0.0
        %240 = vmatpush1.msra.mxu0 %v222
        %241 = vmatprep.subr.mxu0 0.0
        %242 = vmatpush1.msra.mxu0 %v223
        %243 = vmatprep.subr.mxu0 0.0
        %244 = vmatpush1.msra.mxu0 %v224
        %245 = vmatprep.subr.mxu0 0.0
        %246 = vmatpush1.msra.mxu0 %v225
        %247 = vmatprep.subr.mxu0 0.0
        %248 = vmatpush1.msra.mxu0 %v226
        %249 = vmatprep.subr.mxu0 0.0
        %250 = vmatpush1.msra.mxu0 %v227
        %251 = vmatprep.subr.mxu0 0.0
        %252 = vmatpush1.msra.mxu0 %v228
        %253 = vmatprep.subr.mxu0 0.0
        %254 = vmatpush1.msra.mxu0 %v229
        %255 = vmatprep.subr.mxu0 0.0
        %256 = vmatpush1.msra.mxu0 %v230
        %257 = vmatprep.subr.mxu0 0.0
        %258 = vmatpush1.msra.mxu0 %v231
        %259 = vmatprep.subr.mxu0 0.0
        %260 = vmatpush1.msra.mxu0 %v232
        %261 = vmatprep.subr.mxu0 0.0
        %262 = vmatpush1.msra.mxu0 %v233
        %263 = vmatprep.subr.mxu0 0.0
        %264 = vmatpush1.msra.mxu0 %v234
        %265 = vmatprep.subr.mxu0 0.0
        %266 = vmatpush1.msra.mxu0 %v235
        %267 = vmatprep.subr.mxu0 0.0
        %268 = vmatpush1.msra.mxu0 %v236
        %269 = vmatprep.subr.mxu0 0.0
        %270 = vmatpush1.msra.mxu0 0.0
        %271 = vmatprep.subr.mxu0 0.0
        %272 = vmatpush1.msra.mxu0 0.0
        %273 = vmatprep.subr.mxu0 0.0
        %274 = vmatpush1.msra.mxu0 0.0
        %275 = vmatprep.subr.mxu0 0.0
        %276 = vmatpush1.msra.mxu0 0.0
        %277 = vmatprep.subr.mxu0 0.0
        %278 = vmatpush1.msra.mxu0 0.0
        %279 = vmatprep.subr.mxu0 0.0
        %280 = vmatpush1.msra.mxu0 0.0
        %281 = vmatprep.subr.mxu0 0.0
        %282 = vmatpush1.msra.mxu0 0.0
        %283 = vmatprep.subr.mxu0 0.0
        %284 = vmatpush1.msra.mxu0 0.0
        %285 = vmatprep.subr.mxu0 0.0
        %286 = vmatpush1.msra.mxu0 0.0
        %287 = vmatprep.subr.mxu0 0.0
        %288 = vmatpush1.msra.mxu0 0.0
        %289 = vmatprep.subr.mxu0 0.0
        %290 = vmatpush1.msra.mxu0 0.0
        %291 = vmatprep.subr.mxu0 0.0
        %292 = vmatpush1.msra.mxu0 0.0
        %293 = vmatprep.subr.mxu0 0.0
        %294 = vmatpush1.msra.mxu0 0.0
        %295 = vmatprep.subr.mxu0 0.0
        %296 = vmatpush1.msra.mxu0 0.0
        %297 = vmatprep.subr.mxu0 0.0
        %298 = vmatpush1.msra.mxu0 0.0
        %299 = vmatprep.subr.mxu0 0.0
        %300 = vmatpush1.msra.mxu0 0.0
        %301 = vmatprep.mubr.f32.mxu0 0.0
        %302 = vmatmul.mubr.f32.gmra.mrb[0].mxu0 %v220
        %v303 = vpop.f32.mrb[0].mxu0
        %v304 = vadd.f32 0.0, %v303
        %v305 = vpop.f32.mrb[0].mxu0
        %306 = vdwg.mxu0
        %v307 = vtanh.pop %v304
        %308 = vst [vmem:[#allocation2] sm:$0xff] %v307
        %309 = vadd.xlane.f32.xlu0 %v307
        %v310 = vpop.xlane.xlu0 %309
        %v311 = vrot.slane %v310, 4
        %v312 = vadd.f32 %v310, %v311
        %v313 = vrot.slane %v312, 2
        %v314 = vadd.f32 %v312, %v313
        %v315 = vrot.slane %v314, 1
        %v316 = vadd.f32 %v314, %v315
        %s317 = vtos %v316
        %s318 = scalar_lea.smem [#allocation10], %s23
        %319 = sst [smem:[%s318]] %s317
        %v320 = vmul.f32 %v307, %v307
        %321 = vadd.xlane.f32.xlu0 %v320
        %v322 = vpop.xlane.xlu0 %321
        %v323 = vrot.slane %v322, 4
        %v324 = vadd.f32 %v322, %v323
        %v325 = vrot.slane %v324, 2
        %v326 = vadd.f32 %v324, %v325
        %v327 = vrot.slane %v326, 1
        %v328 = vadd.f32 %v326, %v327
        %s329 = vtos %v328
        %s330 = scalar_lea.smem [#allocation11], %s23
        %331 = sst [smem:[%s330]] %s329
        %p332 = scmp.eq.s32.totalorder %s23, 3
        // Predicated region
        $region41: #{tpu_custom_call.1} parent=27 // pred_check
          %p333 = pneg %p332
        $region42: #{tpu_custom_call.1} parent=27 // pred_check_branch
          %335 = sbr.rel (%p333) target = $region44
        $region43: #{tpu_custom_call.1} parent=27 // pred_region
          %336 = vst [vmem:[#allocation9] sm:$0xff] %v307
        $region44: #{tpu_custom_call.1} parent=27 // pred_fallthru
          _
        // Predicated region
        $region45: #{tpu_custom_call.1} parent=27 // pred_check
          %p337 = pneg %p83
        $region46: #{tpu_custom_call.1} parent=27 // pred_check_branch
          %339 = sbr.rel (%p337) target = $region48
        $region47: #{tpu_custom_call.1} parent=27 // pred_region
          %s341 = ssub.s32 128, 128
          %342 = vsyncadd [#allocation5], %s341
          %s344 = sshll.u32 [#allocation9], 4
          %s345 = int_to_ptr.vmem [resolvable:$true] %s344
          %347 = dma.vmem_to_hbm [thread:$0]  %s345, 128, %s2, [#allocation5]
        $region48: #{tpu_custom_call.1} parent=27 // pred_fallthru
          _
        // Predicated region
        $region49: #{tpu_custom_call.1} parent=27 // pred_check
          %p348 = pneg %p104
        $region50: #{tpu_custom_call.1} parent=27 // pred_check_branch
          %350 = sbr.rel (%p348) target = $region52
        $region51: #{tpu_custom_call.1} parent=27 // pred_region
          %s352 = ssub.s32 16, 16
          %353 = vsyncadd [#allocation6], %s352
          %356 = dma.smem_to_hbm [#allocation10], 16, %s3, [#allocation6]
        $region52: #{tpu_custom_call.1} parent=27 // pred_fallthru
          _
        // Predicated region
        $region53: #{tpu_custom_call.1} parent=27 // pred_check
          %p357 = pneg %p125
        $region54: #{tpu_custom_call.1} parent=27 // pred_check_branch
          %359 = sbr.rel (%p357) target = $region56
        $region55: #{tpu_custom_call.1} parent=27 // pred_region
          %s361 = ssub.s32 16, 16
          %362 = vsyncadd [#allocation12], %s361
          %365 = dma.smem_to_hbm [#allocation11], 16, %s4, [#allocation12]
        $region56: #{tpu_custom_call.1} parent=27 // pred_fallthru
          _
        // Predicated region
        $region57: #{tpu_custom_call.1} parent=27 // pred_check
          %p366 = pneg %p83
        $region58: #{tpu_custom_call.1} parent=27 // pred_check_branch
          %368 = sbr.rel (%p366) target = $region60
        $region59: #{tpu_custom_call.1} parent=27 // pred_region
          %369 = dma.done [#allocation5], 128
        $region60: #{tpu_custom_call.1} parent=27 // pred_fallthru
          _
        // Predicated region
        $region61: #{tpu_custom_call.1} parent=27 // pred_check
          %p370 = pneg %p104
        $region62: #{tpu_custom_call.1} parent=27 // pred_check_branch
          %372 = sbr.rel (%p370) target = $region64
        $region63: #{tpu_custom_call.1} parent=27 // pred_region
          %373 = dma.done [#allocation6], 16
        $region64: #{tpu_custom_call.1} parent=27 // pred_fallthru
          _
        // Predicated region
        $region65: #{tpu_custom_call.1} parent=27 // pred_check
          %p374 = pneg %p125
        $region66: #{tpu_custom_call.1} parent=27 // pred_check_branch
          %376 = sbr.rel (%p374) target = $region68
        $region67: #{tpu_custom_call.1} parent=27 // pred_region
          %377 = dma.done [#allocation12], 16
        $region68: #{tpu_custom_call.1} parent=27 // pred_fallthru
          _
        %378 = sfence
      $region28: #{tpu_custom_call.1} parent=5 // pred_fallthru
        _
      %p379 = scmp.le.s32.totalorder 2, %s18
      // Predicated region
      $region69: #{tpu_custom_call.1} parent=5 // pred_check
        %p380 = pneg %p379
      $region70: #{tpu_custom_call.1} parent=5 // pred_check_branch
        %382 = sbr.rel (%p380) target = $region72
      $region71: #{tpu_custom_call.1} parent=5 // pred_region
        %s383 = ssub.s32 %s18, 2
      $region72: #{tpu_custom_call.1} parent=5 // pred_fallthru
        _
    $region6: #{tpu_custom_call.1} parent=1 // loop_footer
      %s22 = sadd.s32 1, %s18
    $region7: #{tpu_custom_call.1} parent=1 // loop_footer_branch
      %17 = sbr.rel target = $region3
    $region8: #{tpu_custom_call.1} parent=1 // loop_exit
      _
    %384 = vsyncpa [#allocation4], 1
    %s385 = scalar_lea.sflag [#allocation4], 1
    %386 = vsyncpa %s385, 1
    %387 = vsyncpa [#allocation8], 1
    %s388 = scalar_lea.sflag [#allocation8], 1
    %389 = vsyncpa %s388, 1
    %390 = vsyncpa [#allocation5], 1
    %s391 = scalar_lea.sflag [#allocation5], 1
    %392 = vsyncpa %s391, 1
    %393 = vsyncpa [#allocation6], 1
    %s394 = scalar_lea.sflag [#allocation6], 1
    %395 = vsyncpa %s394, 1
    %396 = vsyncpa [#allocation12], 1

</llo_original>
